<compile_context>
chip_gen: v5e
topology: v5e:2x2
jax: 0.10.0
libtpu: 0.0.40
codegen_flags: <defaults>
</compile_context>

<pallas_src>
import functools

import jax
import jax.numpy as jnp
from jax.experimental import pallas as pl
from jax.experimental.pallas import tpu as pltpu


def _round_up(v, m):
    return (v + m - 1) // m * m


def _cdiv(a, b):
    return (a + b - 1) // b


def _vmem_capacity_bytes():
    try:
        info = pltpu.get_tpu_info()
        cap = getattr(info, "vmem_capacity_bytes", None)
        if cap:
            return int(cap)
    except Exception:
        pass
    return 64 << 20  # conservative fallback (v7x per-TC VMEM)


def _layernorm_f32(x, a2, bln, eps, n_features):
    """torch-style LayerNorm (unbiased std, eps added to std) in f32."""
    mean = jnp.mean(x, axis=-1, keepdims=True)
    c = x - mean
    var = jnp.sum(c * c, axis=-1, keepdims=True) * (1.0 / (n_features - 1))
    inv = pl.reciprocal(jnp.sqrt(var) + eps)          # EUP slot, exact
    return a2 * c * inv + bln


# --------------------------------------------------------------------------- #
# Fast path: weights fully resident in VMEM, grid only over M.
# --------------------------------------------------------------------------- #
def _resident_kernel(x_ref, a2_ref, bln_ref, w1_ref, b1_ref, w2_ref, b2_ref,
                     o_ref, *, eps, n_features):
    x = x_ref[...].astype(jnp.float32)
    normed = _layernorm_f32(x, a2_ref[...].astype(jnp.float32),
                            bln_ref[...].astype(jnp.float32), eps, n_features)
    normed = normed.astype(w1_ref.dtype)              # single cast, weight dtype
    h = jnp.dot(normed, w1_ref[...], preferred_element_type=jnp.float32)
    h = jnp.maximum(h + b1_ref[...].astype(jnp.float32), 0.0).astype(w2_ref.dtype)
    # TODO(synk): dropout omitted (eval-mode identity); training needs pltpu.prng_* masking.
    out = (x + b2_ref[...].astype(jnp.float32)
           + jnp.dot(h, w2_ref[...], preferred_element_type=jnp.float32))
    o_ref[...] = out.astype(o_ref.dtype)


# --------------------------------------------------------------------------- #
# Streamed path: weights streamed over the FFN hidden (P) axis.
# --------------------------------------------------------------------------- #
def _streamed_kernel(x_ref, a2_ref, bln_ref, w1_ref, b1_ref, w2_ref, b2_ref,
                     o_ref, *scratch, eps, n_features, acc_in_out):
    p = pl.program_id(1)
    norm_ref = scratch[0]
    acc_ref = o_ref if acc_in_out else scratch[1]

    @pl.when(p == 0)
    def _prologue():
        x = x_ref[...].astype(jnp.float32)
        normed = _layernorm_f32(x, a2_ref[...].astype(jnp.float32),
                                bln_ref[...].astype(jnp.float32), eps, n_features)
        norm_ref[...] = normed.astype(norm_ref.dtype)      # weight dtype, once per M tile
        # Residual + second-layer bias folded into the accumulator init.
        acc_ref[...] = (x + b2_ref[...].astype(jnp.float32)).astype(acc_ref.dtype)

    # Hot loop: two MXU matmuls per P slice; bias add + relu ride on the VPU.
    h = jnp.dot(norm_ref[...], w1_ref[...], preferred_element_type=jnp.float32)
    h = jnp.maximum(h + b1_ref[...].astype(jnp.float32), 0.0).astype(w2_ref.dtype)
    # TODO(synk): dropout omitted (eval-mode identity).
    acc_ref[...] += jnp.dot(h, w2_ref[...],
                            preferred_element_type=jnp.float32).astype(acc_ref.dtype)

    if not acc_in_out:
        @pl.when(p == pl.num_programs(1) - 1)
        def _epilogue():
            o_ref[...] = acc_ref[...].astype(o_ref.dtype)


# --------------------------------------------------------------------------- #
# VMEM footprint models (double-buffered tiles + live intermediates).
# --------------------------------------------------------------------------- #
def _resident_bytes(tm, H, P, dsz, wsz):
    return (2 * tm * H * dsz                 # x tile (double-buffered)
            + 2 * tm * H * dsz               # out tile
            + 2 * (H * P + P * H) * wsz      # w1 + w2 (buffer pair each)
            + 2 * (P + 3 * H) * wsz          # biases + LN params
            + tm * H * (4 + wsz)             # normed f32 + weight-dtype copy
            + tm * P * (4 + wsz)             # h f32 + post-relu copy
            + tm * H * 4)                    # f32 residual/accumulate temp


def _streamed_bytes(tm, tp, H, dsz, wsz, acc_in_out):
    b = (2 * tm * H * dsz                    # x tile
         + 2 * tm * H * dsz                  # out tile
         + 2 * (H * tp + tp * H) * wsz       # w1/w2 P-slices
         + 2 * (tp + 3 * H) * wsz            # biases + LN params
         + tm * H * wsz                      # LayerNorm scratch (weight dtype)
         + tm * tp * (4 + wsz)               # h f32 + post-relu copy
         + tm * H * 4)                       # prologue f32 temps
    if not acc_in_out:
        b += tm * H * 4                      # f32 accumulator scratch
    return b


def sublayer_connection(x, a2, bln, w1, b1, w2, b2, *, eps=1e-6,
                        tm_max=None, tp_max=None, force_streaming=False):
    """x: (B,S,H). a2,bln,b2: (1,H). w1: (H,P). b1: (1,P). w2: (P,H)."""
    B, S, H = x.shape
    P = w1.shape[1]
    M = B * S
    dt = x.dtype
    wdt = w1.dtype
    dsz = jnp.dtype(dt).itemsize
    wsz = jnp.dtype(wdt).itemsize

    vmem_cap = _vmem_capacity_bytes()
    budget = int(0.80 * vmem_cap)

    # Dtype-aware sublane rounding (packed dtypes travel in pairs/quads).
    sub = {1: 32, 2: 16, 4: 8}.get(dsz, 8)

    # ---- tm selection ------------------------------------------------------
    tm_cap = 1024 if budget >= (80 << 20) else 512   # bigger tiles on 128 MiB parts
    if tm_max is not None:
        tm_cap = min(tm_cap, tm_max)
    tm_cap = max(sub, _round_up(tm_cap, sub))
    tm = min(tm_cap, _round_up(M, sub))
    # Megacore balance: make sure both TensorCores get at least one M block.
    if _cdiv(M, tm) < 2 and M > sub:
        tm = _round_up(_cdiv(M, 2), sub)

    acc_in_out = (jnp.dtype(dt) == jnp.float32)

    # ---- path selection ----------------------------------------------------
    resident = (not force_streaming) and (_resident_bytes(tm, H, P, dsz, wsz) <= budget)

    if not resident:
        tp_cap = 512 if tp_max is None else tp_max
        tp = min(tp_cap, P)
        if tp < P:
            tp = max(128, (tp // 128) * 128)          # lane-aligned P slices
        # Shrink tp, then tm, until the real footprint fits the budget.
        while _streamed_bytes(tm, tp, H, dsz, wsz, acc_in_out) > budget and tp > 128:
            tp = max(128, tp // 2)
        while _streamed_bytes(tm, tp, H, dsz, wsz, acc_in_out) > budget and tm > sub:
            tm = max(sub, _round_up(tm // 2, sub))

    M_pad = _round_up(M, tm)
    x2d = x.reshape(M, H)
    if M_pad != M:
        x2d = jnp.pad(x2d, ((0, M_pad - M), (0, 0)))
    m_blocks = M_pad // tm

    kernel_common = dict(eps=eps, n_features=H)
    weight_bytes = (H * P + P * H) * wsz
    flops = 4 * M * H * P + 10 * M * H

    if resident:
        footprint = _resident_bytes(tm, H, P, dsz, wsz)
        vmem_limit = int(min(max(int(1.5 * footprint), 32 << 20), int(0.9 * vmem_cap)))
        cost = pl.CostEstimate(
            flops=flops, transcendentals=2 * M,
            bytes_accessed=2 * M * H * dsz + weight_bytes + (P + 3 * H) * wsz)

        out2d = pl.pallas_call(
            functools.partial(_resident_kernel, **kernel_common),
            out_shape=jax.ShapeDtypeStruct((M_pad, H), dt),
            grid_spec=pltpu.PrefetchScalarGridSpec(
                num_scalar_prefetch=0,
                grid=(m_blocks,),
                in_specs=[
                    pl.BlockSpec((tm, H), lambda i: (i, 0)),   # x tile
                    pl.BlockSpec((1, H), lambda i: (0, 0)),    # LN scale a_2
                    pl.BlockSpec((1, H), lambda i: (0, 0)),    # LN shift b_2
                    pl.BlockSpec((H, P), lambda i: (0, 0)),    # w1 (resident)
                    pl.BlockSpec((1, P), lambda i: (0, 0)),    # b1
                    pl.BlockSpec((P, H), lambda i: (0, 0)),    # w2 (resident)
                    pl.BlockSpec((1, H), lambda i: (0, 0)),    # FFN output bias
                ],
                out_specs=pl.BlockSpec((tm, H), lambda i: (i, 0)),
                scratch_shapes=[]),
            compiler_params=pltpu.CompilerParams(
                dimension_semantics=("parallel",),
                vmem_limit_bytes=vmem_limit),
            cost_estimate=cost,
        )(x2d, a2, bln, w1, b1, w2, b2)
    else:
        P_pad = _round_up(P, tp)
        w1_p, b1_p, w2_p = w1, b1, w2
        if P_pad != P:
            w1_p = jnp.pad(w1, ((0, 0), (0, P_pad - P)))
            b1_p = jnp.pad(b1, ((0, 0), (0, P_pad - P)))
            w2_p = jnp.pad(w2, ((0, P_pad - P), (0, 0)))
        p_blocks = P_pad // tp

        footprint = _streamed_bytes(tm, tp, H, dsz, wsz, acc_in_out)
        vmem_limit = int(min(max(int(1.5 * footprint), 32 << 20), int(0.9 * vmem_cap)))
        cost = pl.CostEstimate(
            flops=flops, transcendentals=2 * M,
            # weights are re-streamed once per M block
            bytes_accessed=(2 * M * H * dsz + weight_bytes * m_blocks
                            + (P + 3 * H) * wsz))

        scratch = [pltpu.VMEM((tm, H), wdt)]              # LayerNorm(x), weight dtype
        if not acc_in_out:
            scratch.append(pltpu.VMEM((tm, H), jnp.float32))

        # NOTE: if profiling shows exposed weight DMA at the M-tile boundary,
        # add pipeline_mode=pl.Buffered(3) to the w1/w2 BlockSpecs and sweep.
        out2d = pl.pallas_call(
            functools.partial(_streamed_kernel, acc_in_out=acc_in_out, **kernel_common),
            out_shape=jax.ShapeDtypeStruct((M_pad, H), dt),
            grid_spec=pltpu.PrefetchScalarGridSpec(
                num_scalar_prefetch=0,
                grid=(m_blocks, p_blocks),
                in_specs=[
                    pl.BlockSpec((tm, H), lambda i, p: (i, 0)),   # x tile (constant in p)
                    pl.BlockSpec((1, H), lambda i, p: (0, 0)),    # LN scale a_2
                    pl.BlockSpec((1, H), lambda i, p: (0, 0)),    # LN shift b_2
                    pl.BlockSpec((H, tp), lambda i, p: (0, p)),   # w1 P-slice
                    pl.BlockSpec((1, tp), lambda i, p: (0, p)),   # b1 P-slice
                    pl.BlockSpec((tp, H), lambda i, p: (p, 0)),   # w2 P-slice
                    pl.BlockSpec((1, H), lambda i, p: (0, 0)),    # FFN output bias
                ],
                out_specs=pl.BlockSpec((tm, H), lambda i, p: (i, 0)),
                scratch_shapes=scratch),
            compiler_params=pltpu.CompilerParams(
                dimension_semantics=("parallel", "arbitrary"),
                vmem_limit_bytes=vmem_limit),
            cost_estimate=cost,
        )(x2d, a2, bln, w1_p, b1_p, w2_p, b2)

    return out2d[:M].reshape(B, S, H)


def _reference(x, a2, bln, w1, b1, w2, b2, eps=1e-6):
    mean = jnp.mean(x, axis=-1, keepdims=True)
    c = x - mean
    var = jnp.sum(c * c, axis=-1, keepdims=True) / (x.shape[-1] - 1)
    std = jnp.sqrt(var)
    normed = a2[0] * c / (std + eps) + bln[0]
    h = jnp.maximum(normed @ w1 + b1[0], 0.0)
    return x + (h @ w2 + b2[0])


if __name__ == "__main__":
    # Small config: batch=2, seq=8, hidden_dim=32, pff_dim=64
    B, S, H, P = 2, 8, 32, 64

    key = jax.random.PRNGKey(0)
    kx, ka, kb, k1, kb1, k2, kb2, k1b, kb1b, k2b = jax.random.split(key, 10)

    x = jax.random.normal(kx, (B, S, H), dtype=jnp.float32)
    # LayerNorm affine params (torch inits ones/zeros; perturb for a non-trivial test).
    a2 = 1.0 + 0.1 * jax.random.normal(ka, (1, H), dtype=jnp.float32)
    bln = 0.1 * jax.random.normal(kb, (1, H), dtype=jnp.float32)
    # Concrete `sublayer` (position-wise FFN), PyTorch-style uniform init.
    w1 = jax.random.uniform(k1, (H, P), jnp.float32, -1.0 / H ** 0.5, 1.0 / H ** 0.5)
    b1 = jax.random.uniform(kb1, (1, P), jnp.float32, -1.0 / H ** 0.5, 1.0 / H ** 0.5)
    w2 = jax.random.uniform(k2, (P, H), jnp.float32, -1.0 / P ** 0.5, 1.0 / P ** 0.5)
    b2 = jax.random.uniform(kb2, (1, H), jnp.float32, -1.0 / P ** 0.5, 1.0 / P ** 0.5)

    # ---- resident-weight fast path ----
    out = jax.block_until_ready(sublayer_connection(x, a2, bln, w1, b1, w2, b2))
    ref = _reference(x, a2, bln, w1, b1, w2, b2)
    assert out.shape == (B, S, H)
    err = float(jnp.max(jnp.abs(out - ref)))
    assert jnp.allclose(out, ref, atol=1e-4, rtol=1e-4), f"resident path mismatch, max err {err}"

    # ---- streamed (P-tiled) path, lane-aligned tp=128 ----
    P2 = 256
    w1b = jax.random.uniform(k1b, (H, P2), jnp.float32, -1.0 / H ** 0.5, 1.0 / H ** 0.5)
    b1b = jax.random.uniform(kb1b, (1, P2), jnp.float32, -1.0 / H ** 0.5, 1.0 / H ** 0.5)
    w2b = jax.random.uniform(k2b, (P2, H), jnp.float32, -1.0 / P2 ** 0.5, 1.0 / P2 ** 0.5)
    out2 = jax.block_until_ready(
        sublayer_connection(x, a2, bln, w1b, b1b, w2b, b2,
                            force_streaming=True, tp_max=128))
    ref2 = _reference(x, a2, bln, w1b, b1b, w2b, b2)
    err2 = float(jnp.max(jnp.abs(out2 - ref2)))
    assert jnp.allclose(out2, ref2, atol=1e-4, rtol=1e-4), f"streamed path mismatch, max err {err2}"

    print("KERNEL_OK")
</pallas_src>

<mosaic_0001>
module attributes {stable_mosaic.version = 11 : i64} {
  func.func @_resident_kernel(%arg0: i32, %arg1: memref<8x32xf32, #tpu.memory_space<vmem>>, %arg2: memref<1x32xf32, #tpu.memory_space<vmem>>, %arg3: memref<1x32xf32, #tpu.memory_space<vmem>>, %arg4: memref<32x64xf32, #tpu.memory_space<vmem>>, %arg5: memref<1x64xf32, #tpu.memory_space<vmem>>, %arg6: memref<64x32xf32, #tpu.memory_space<vmem>>, %arg7: memref<1x32xf32, #tpu.memory_space<vmem>>, %arg8: memref<8x32xf32, #tpu.memory_space<vmem>>) attributes {dimension_semantics = [#tpu.dimension_semantics<parallel>], iteration_bounds = array<i64: 2>, scalar_prefetch = 0 : i64, scratch_operands = 0 : i64, tpu.core_type = #tpu.core_type<tc>, window_params = [{transform_indices = @transform_0, window_bounds = array<i64: 8, 32>}, {pipeline_mode = #tpu.pipeline_mode<synchronous>, transform_indices = @transform_1, window_bounds = array<i64: 1, 32>}, {pipeline_mode = #tpu.pipeline_mode<synchronous>, transform_indices = @transform_2, window_bounds = array<i64: 1, 32>}, {pipeline_mode = #tpu.pipeline_mode<synchronous>, transform_indices = @transform_3, window_bounds = array<i64: 32, 64>}, {pipeline_mode = #tpu.pipeline_mode<synchronous>, transform_indices = @transform_4, window_bounds = array<i64: 1, 64>}, {pipeline_mode = #tpu.pipeline_mode<synchronous>, transform_indices = @transform_5, window_bounds = array<i64: 64, 32>}, {pipeline_mode = #tpu.pipeline_mode<synchronous>, transform_indices = @transform_6, window_bounds = array<i64: 1, 32>}, {transform_indices = @transform_7, window_bounds = array<i64: 8, 32>}]} {
    %c0 = arith.constant 0 : index
    %c0_0 = arith.constant 0 : index
    %0 = vector.load %arg1[%c0, %c0_0] : memref<8x32xf32, #tpu.memory_space<vmem>>, vector<8x32xf32>
    %c0_1 = arith.constant 0 : index
    %c0_2 = arith.constant 0 : index
    %1 = vector.load %arg2[%c0_1, %c0_2] : memref<1x32xf32, #tpu.memory_space<vmem>>, vector<1x32xf32>
    %c0_3 = arith.constant 0 : index
    %c0_4 = arith.constant 0 : index
    %2 = vector.load %arg3[%c0_3, %c0_4] : memref<1x32xf32, #tpu.memory_space<vmem>>, vector<1x32xf32>
    %cst = arith.constant dense<0.000000e+00> : vector<8xf32>
    %3 = vector.multi_reduction <add>, %0, %cst [1] : vector<8x32xf32> to vector<8xf32>
    %4 = vector.shape_cast %3 : vector<8xf32> to vector<8x1xf32>
    %cst_5 = arith.constant 3.200000e+01 : f32
    %5 = vector.broadcast %cst_5 : f32 to vector<8x1xf32>
    %6 = arith.divf %4, %5 : vector<8x1xf32>
    %7 = vector.broadcast %6 : vector<8x1xf32> to vector<8x32xf32>
    %8 = arith.subf %0, %7 : vector<8x32xf32>
    %9 = arith.mulf %8, %8 : vector<8x32xf32>
    %cst_6 = arith.constant dense<0.000000e+00> : vector<8xf32>
    %10 = vector.multi_reduction <add>, %9, %cst_6 [1] : vector<8x32xf32> to vector<8xf32>
    %11 = vector.shape_cast %10 : vector<8xf32> to vector<8x1xf32>
    %cst_7 = arith.constant 0.0322580636 : f32
    %12 = vector.broadcast %cst_7 : f32 to vector<8x1xf32>
    %13 = arith.mulf %11, %12 : vector<8x1xf32>
    %14 = math.sqrt %13 : vector<8x1xf32>
    %cst_8 = arith.constant 9.99999997E-7 : f32
    %15 = vector.broadcast %cst_8 : f32 to vector<8x1xf32>
    %16 = arith.addf %14, %15 : vector<8x1xf32>
    %17 = tpu.reciprocal %16 : vector<8x1xf32> -> vector<8x1xf32>
    %18 = vector.broadcast %1 : vector<1x32xf32> to vector<8x32xf32>
    %19 = arith.mulf %18, %8 : vector<8x32xf32>
    %20 = vector.broadcast %17 : vector<8x1xf32> to vector<8x32xf32>
    %21 = arith.mulf %19, %20 : vector<8x32xf32>
    %22 = vector.broadcast %2 : vector<1x32xf32> to vector<8x32xf32>
    %23 = arith.addf %21, %22 : vector<8x32xf32>
    %c0_9 = arith.constant 0 : index
    %c0_10 = arith.constant 0 : index
    %24 = vector.load %arg4[%c0_9, %c0_10] : memref<32x64xf32, #tpu.memory_space<vmem>>, vector<32x64xf32>
    %cst_11 = arith.constant dense<0.000000e+00> : vector<8x64xf32>
    %25 = tpu.matmul %23, %24, %cst_11 {dimension_numbers = #tpu.dot_dimension_numbers<[1], [0], [0], [1], [0, 0, 1, 1], [], []>} : vector<8x32xf32>, vector<32x64xf32>, vector<8x64xf32> -> vector<8x64xf32>
    %c0_12 = arith.constant 0 : index
    %c0_13 = arith.constant 0 : index
    %26 = vector.load %arg5[%c0_12, %c0_13] : memref<1x64xf32, #tpu.memory_space<vmem>>, vector<1x64xf32>
    %27 = vector.broadcast %26 : vector<1x64xf32> to vector<8x64xf32>
    %28 = arith.addf %25, %27 : vector<8x64xf32>
    %cst_14 = arith.constant 0.000000e+00 : f32
    %29 = vector.broadcast %cst_14 : f32 to vector<8x64xf32>
    %30 = arith.maximumf %28, %29 : vector<8x64xf32>
    %c0_15 = arith.constant 0 : index
    %c0_16 = arith.constant 0 : index
    %31 = vector.load %arg7[%c0_15, %c0_16] : memref<1x32xf32, #tpu.memory_space<vmem>>, vector<1x32xf32>
    %32 = vector.broadcast %31 : vector<1x32xf32> to vector<8x32xf32>
    %33 = arith.addf %0, %32 : vector<8x32xf32>
    %c0_17 = arith.constant 0 : index
    %c0_18 = arith.constant 0 : index
    %34 = vector.load %arg6[%c0_17, %c0_18] : memref<64x32xf32, #tpu.memory_space<vmem>>, vector<64x32xf32>
    %cst_19 = arith.constant dense<0.000000e+00> : vector<8x32xf32>
    %35 = tpu.matmul %30, %34, %cst_19 {dimension_numbers = #tpu.dot_dimension_numbers<[1], [0], [0], [1], [0, 0, 1, 1], [], []>} : vector<8x64xf32>, vector<64x32xf32>, vector<8x32xf32> -> vector<8x32xf32>
    %36 = arith.addf %33, %35 : vector<8x32xf32>
    %c0_20 = arith.constant 0 : index
    %c0_21 = arith.constant 0 : index
    %37 = vector.load %arg8[%c0_20, %c0_21] : memref<8x32xf32, #tpu.memory_space<vmem>>, vector<8x32xf32>
    tpu.vector_store %arg8[%c0_20, %c0_21], %36 {strides = array<i32>} : memref<8x32xf32, #tpu.memory_space<vmem>>, vector<8x32xf32>,
    return
  }
  func.func @transform_0(%arg0: i32) -> (i32, i32) {
    %c0_i32 = arith.constant 0 : i32
    %c0_i32_0 = arith.constant 0 : i32
    return %arg0, %c0_i32 : i32, i32
  }
  func.func @transform_1(%arg0: i32) -> (i32, i32) {
    %c0_i32 = arith.constant 0 : i32
    %c0_i32_0 = arith.constant 0 : i32
    %c0_i32_1 = arith.constant 0 : i32
    return %c0_i32, %c0_i32_0 : i32, i32
  }
  func.func @transform_2(%arg0: i32) -> (i32, i32) {
    %c0_i32 = arith.constant 0 : i32
    %c0_i32_0 = arith.constant 0 : i32
    %c0_i32_1 = arith.constant 0 : i32
    return %c0_i32, %c0_i32_0 : i32, i32
  }
  func.func @transform_3(%arg0: i32) -> (i32, i32) {
    %c0_i32 = arith.constant 0 : i32
    %c0_i32_0 = arith.constant 0 : i32
    %c0_i32_1 = arith.constant 0 : i32
    return %c0_i32, %c0_i32_0 : i32, i32
  }
  func.func @transform_4(%arg0: i32) -> (i32, i32) {
    %c0_i32 = arith.constant 0 : i32
    %c0_i32_0 = arith.constant 0 : i32
    %c0_i32_1 = arith.constant 0 : i32
    return %c0_i32, %c0_i32_0 : i32, i32
  }
  func.func @transform_5(%arg0: i32) -> (i32, i32) {
    %c0_i32 = arith.constant 0 : i32
    %c0_i32_0 = arith.constant 0 : i32
    %c0_i32_1 = arith.constant 0 : i32
    return %c0_i32, %c0_i32_0 : i32, i32
  }
  func.func @transform_6(%arg0: i32) -> (i32, i32) {
    %c0_i32 = arith.constant 0 : i32
    %c0_i32_0 = arith.constant 0 : i32
    %c0_i32_1 = arith.constant 0 : i32
    return %c0_i32, %c0_i32_0 : i32, i32
  }
  func.func @transform_7(%arg0: i32) -> (i32, i32) {
    %c0_i32 = arith.constant 0 : i32
    %c0_i32_0 = arith.constant 0 : i32
    return %arg0, %c0_i32 : i32, i32
  }
}

</mosaic_0001>

<llo_original>
// kernel: tpu_custom_call.1
$region0: #{tpu_custom_call.1}
  #allocation0 [shape = 'u32[]', space=smem, size = 0x4, offset = 0x4, fixed_abs, tag = 'smem constant byte address 0x4 - core index']
  #allocation1 [shape = 'u32[72,128]{1,0:T(1,128)}', space=vmem, size = 0x9000, scoped, tag = 'internal scratch']
  %s0 = inlined_call_operand.vmem [shape: f32[16,32], index: 0, kind: input, shape index: {}]
  %s1 = inlined_call_operand.vmem [shape: f32[1,32], index: 1, kind: input, shape index: {}]
  %s2 = inlined_call_operand.vmem [shape: f32[1,32], index: 2, kind: input, shape index: {}]
  %s3 = inlined_call_operand.vmem [shape: f32[32,64], index: 3, kind: input, shape index: {}]
  %s4 = inlined_call_operand.vmem [shape: f32[1,64], index: 4, kind: input, shape index: {}]
  %s5 = inlined_call_operand.vmem [shape: f32[64,32], index: 5, kind: input, shape index: {}]
  %s6 = inlined_call_operand.vmem [shape: f32[1,32], index: 6, kind: input, shape index: {}]
  %s7 = inlined_call_operand.hbm [shape: f32[16,32], index: 7, kind: output, shape index: {}]
  %s8 = sld [smem:[#allocation0]]
  $region61: #{tpu_custom_call.1} parent=0
    _
  %s10 = ssub.s32 1, %s8
  %s11 = scalar_select 0, %s10, %s8
  $region1: #{tpu_custom_call.1} parent=0
    #allocation2 [shape = 'u8[8192]{0}', space=vmem, size = 0x2000, scoped, tag = 'output window, operand 0']
    #allocation3 [shape = 's32[2]{0}', space=sflag, size = 0x8, scoped, tag = 'scoped memory for tpu_custom_call.1']
    %12 = vsyncpa [#allocation3], 0
    %s13 = scalar_lea.sflag [#allocation3], 1
    %14 = vsyncpa %s13, 0
    loop: start=0, step=1, limit=4
    $region2: #{tpu_custom_call.1} parent=1 // loop_pre_header
      _
    $region3: #{tpu_custom_call.1} parent=1 // loop_header
      %s16 = sphi 0, %s20
      %p17 = scmp.ge.s32.totalorder %s16, 4
      %s26 = sphi 0, %s28
      %s29 = sphi 0, %s26
      %s30 = sphi 0, %s29
      %s46 = sphi 0, %s30
      %s50 = sphi 0, %s50
      %s52 = sphi 0, %s50
      %s53 = sphi 0, %s52
      %s67 = sphi 0, %s53
      %s71 = sphi 0, %s71
      %s73 = sphi 0, %s71
      %s74 = sphi 0, %s73
      %s88 = sphi 0, %s74
      %s92 = sphi 0, %s92
      %s94 = sphi 0, %s92
      %s95 = sphi 0, %s94
      %s109 = sphi 0, %s95
      %s113 = sphi 0, %s113
      %s115 = sphi 0, %s113
      %s116 = sphi 0, %s115
      %s130 = sphi 0, %s116
      %s134 = sphi 0, %s134
      %s136 = sphi 0, %s134
      %s137 = sphi 0, %s136
      %s151 = sphi 0, %s137
      %s155 = sphi 0, %s155
      %s157 = sphi 0, %s155
      %s158 = sphi 0, %s157
      %s172 = sphi 0, %s158
      %s178 = sphi 0, %s180
      %s181 = sphi 0, %s178
      %s182 = sphi 0, %s181
      %s198 = sphi 0, %s182
    $region4: #{tpu_custom_call.1} parent=1 // loop_header_branch
      %19 = sbr.rel (%p17) target = $region8
    $region5: #{tpu_custom_call.1} parent=1 // loop_body
      %s21 = ssub.s32 %s16, 1
      %s22 = ssub.s32 %s16, 2
      %s23 = sadd.s32 %s16, 1
      %s24 = ssub.s32 %s16, %s23
      %p25 = scmp.eq.s32.totalorder %s24, 0
      %s27 = sadd.s32 %s26, 1
      %s28 = scalar_select %p25, %s26, %s27
      %p31 = pneg %p25
      %p32 = scmp.eq.s32.totalorder %s16, 1
      %p33 = por %p31, %p32
      %p34 = scmp.ne.s32.totalorder %s26, %s29
      %p35 = scmp.eq.s32.totalorder %s16, 0
      %p36 = por %p34, %p35
      %p37 = scmp.ne.s32.totalorder %s26, %s29
      %p38 = scmp.eq.s32.totalorder %s21, 1
      %p39 = por %p37, %p38
      %p40 = scmp.ne.s32.totalorder %s29, %s30
      %p41 = scmp.eq.s32.totalorder %s21, 0
      %p42 = por %p40, %p41
      %p43 = scmp.ne.s32.totalorder %s29, %s30
      %p44 = scmp.eq.s32.totalorder %s22, 1
      %p45 = por %p43, %p44
      %p47 = scmp.ne.s32.totalorder %s30, %s46
      %p48 = scmp.eq.s32.totalorder %s22, 0
      %p49 = por %p47, %p48
      %s51 = sadd.s32 %s50, 1
      %p54 = scmp.eq.s32.totalorder %s16, 1
      %p55 = scmp.ne.s32.totalorder %s50, %s52
      %p56 = scmp.eq.s32.totalorder %s16, 0
      %p57 = por %p55, %p56
      %p58 = scmp.ne.s32.totalorder %s50, %s52
      %p59 = scmp.eq.s32.totalorder %s21, 1
      %p60 = por %p58, %p59
      %p61 = scmp.ne.s32.totalorder %s52, %s53
      %p62 = scmp.eq.s32.totalorder %s21, 0
      %p63 = por %p61, %p62
      %p64 = scmp.ne.s32.totalorder %s52, %s53
      %p65 = scmp.eq.s32.totalorder %s22, 1
      %p66 = por %p64, %p65
      %p68 = scmp.ne.s32.totalorder %s53, %s67
      %p69 = scmp.eq.s32.totalorder %s22, 0
      %p70 = por %p68, %p69
      %s72 = sadd.s32 %s71, 1
      %p75 = scmp.eq.s32.totalorder %s16, 1
      %p76 = scmp.ne.s32.totalorder %s71, %s73
      %p77 = scmp.eq.s32.totalorder %s16, 0
      %p78 = por %p76, %p77
      %p79 = scmp.ne.s32.totalorder %s71, %s73
      %p80 = scmp.eq.s32.totalorder %s21, 1
      %p81 = por %p79, %p80
      %p82 = scmp.ne.s32.totalorder %s73, %s74
      %p83 = scmp.eq.s32.totalorder %s21, 0
      %p84 = por %p82, %p83
      %p85 = scmp.ne.s32.totalorder %s73, %s74
      %p86 = scmp.eq.s32.totalorder %s22, 1
      %p87 = por %p85, %p86
      %p89 = scmp.ne.s32.totalorder %s74, %s88
      %p90 = scmp.eq.s32.totalorder %s22, 0
      %p91 = por %p89, %p90
      %s93 = sadd.s32 %s92, 1
      %p96 = scmp.eq.s32.totalorder %s16, 1
      %p97 = scmp.ne.s32.totalorder %s92, %s94
      %p98 = scmp.eq.s32.totalorder %s16, 0
      %p99 = por %p97, %p98
      %p100 = scmp.ne.s32.totalorder %s92, %s94
      %p101 = scmp.eq.s32.totalorder %s21, 1
      %p102 = por %p100, %p101
      %p103 = scmp.ne.s32.totalorder %s94, %s95
      %p104 = scmp.eq.s32.totalorder %s21, 0
      %p105 = por %p103, %p104
      %p106 = scmp.ne.s32.totalorder %s94, %s95
      %p107 = scmp.eq.s32.totalorder %s22, 1
      %p108 = por %p106, %p107
      %p110 = scmp.ne.s32.totalorder %s95, %s109
      %p111 = scmp.eq.s32.totalorder %s22, 0
      %p112 = por %p110, %p111
      %s114 = sadd.s32 %s113, 1
      %p117 = scmp.eq.s32.totalorder %s16, 1
      %p118 = scmp.ne.s32.totalorder %s113, %s115
      %p119 = scmp.eq.s32.totalorder %s16, 0
      %p120 = por %p118, %p119
      %p121 = scmp.ne.s32.totalorder %s113, %s115
      %p122 = scmp.eq.s32.totalorder %s21, 1
      %p123 = por %p121, %p122
      %p124 = scmp.ne.s32.totalorder %s115, %s116
      %p125 = scmp.eq.s32.totalorder %s21, 0
      %p126 = por %p124, %p125
      %p127 = scmp.ne.s32.totalorder %s115, %s116
      %p128 = scmp.eq.s32.totalorder %s22, 1
      %p129 = por %p127, %p128
      %p131 = scmp.ne.s32.totalorder %s116, %s130
      %p132 = scmp.eq.s32.totalorder %s22, 0
      %p133 = por %p131, %p132
      %s135 = sadd.s32 %s134, 1
      %p138 = scmp.eq.s32.totalorder %s16, 1
      %p139 = scmp.ne.s32.totalorder %s134, %s136
      %p140 = scmp.eq.s32.totalorder %s16, 0
      %p141 = por %p139, %p140
      %p142 = scmp.ne.s32.totalorder %s134, %s136
      %p143 = scmp.eq.s32.totalorder %s21, 1
      %p144 = por %p142, %p143
      %p145 = scmp.ne.s32.totalorder %s136, %s137
      %p146 = scmp.eq.s32.totalorder %s21, 0
      %p147 = por %p145, %p146
      %p148 = scmp.ne.s32.totalorder %s136, %s137
      %p149 = scmp.eq.s32.totalorder %s22, 1
      %p150 = por %p148, %p149
      %p152 = scmp.ne.s32.totalorder %s137, %s151
      %p153 = scmp.eq.s32.totalorder %s22, 0
      %p154 = por %p152, %p153
      %s156 = sadd.s32 %s155, 1
      %p159 = scmp.eq.s32.totalorder %s16, 1
      %p160 = scmp.ne.s32.totalorder %s155, %s157
      %p161 = scmp.eq.s32.totalorder %s16, 0
      %p162 = por %p160, %p161
      %p163 = scmp.ne.s32.totalorder %s155, %s157
      %p164 = scmp.eq.s32.totalorder %s21, 1
      %p165 = por %p163, %p164
      %p166 = scmp.ne.s32.totalorder %s157, %s158
      %p167 = scmp.eq.s32.totalorder %s21, 0
      %p168 = por %p166, %p167
      %p169 = scmp.ne.s32.totalorder %s157, %s158
      %p170 = scmp.eq.s32.totalorder %s22, 1
      %p171 = por %p169, %p170
      %p173 = scmp.ne.s32.totalorder %s158, %s172
      %p174 = scmp.eq.s32.totalorder %s22, 0
      %p175 = por %p173, %p174
      %s176 = ssub.s32 %s16, %s23
      %p177 = scmp.eq.s32.totalorder %s176, 0
      %s179 = sadd.s32 %s178, 1
      %s180 = scalar_select %p177, %s178, %s179
      %p183 = pneg %p177
      %p184 = scmp.eq.s32.totalorder %s16, 1
      %p185 = por %p183, %p184
      %p186 = scmp.ne.s32.totalorder %s178, %s181
      %p187 = scmp.eq.s32.totalorder %s16, 0
      %p188 = por %p186, %p187
      %p189 = scmp.ne.s32.totalorder %s178, %s181
      %p190 = scmp.eq.s32.totalorder %s21, 1
      %p191 = por %p189, %p190
      %p192 = scmp.ne.s32.totalorder %s181, %s182
      %p193 = scmp.eq.s32.totalorder %s21, 0
      %p194 = por %p192, %p193
      %p195 = scmp.ne.s32.totalorder %s181, %s182
      %p196 = scmp.eq.s32.totalorder %s22, 1
      %p197 = por %p195, %p196
      %p199 = scmp.ne.s32.totalorder %s182, %s198
      %p200 = scmp.eq.s32.totalorder %s22, 0
      %p201 = por %p199, %p200
      %p202 = scmp.le.s32.totalorder 1, %s16
      %p203 = scmp.lt.s32.totalorder %s16, 3
      %p204 = pnand %p202, %p203
      %p205 = pneg %p204
      // Predicated region
      $region9: #{tpu_custom_call.1} parent=5 // pred_check
        _
      $region10: #{tpu_custom_call.1} parent=5 // pred_check_branch
        %207 = sbr.rel (%p204) target = $region12
      $region11: #{tpu_custom_call.1} parent=5 // pred_region
        %s208 = ssub.s32 %s16, 1
        // Predicated region
        $region13: #{tpu_custom_call.1} parent=11 // pred_check
          %p209 = pneg %p63
        $region14: #{tpu_custom_call.1} parent=11 // pred_check_branch
          %211 = sbr.rel (%p209) target = $region16
        $region15: #{tpu_custom_call.1} parent=11 // pred_region
          _
        $region16: #{tpu_custom_call.1} parent=11 // pred_fallthru
          _
        // Predicated region
        $region17: #{tpu_custom_call.1} parent=11 // pred_check
          %p212 = pneg %p84
        $region18: #{tpu_custom_call.1} parent=11 // pred_check_branch
          %214 = sbr.rel (%p212) target = $region20
        $region19: #{tpu_custom_call.1} parent=11 // pred_region
          _
        $region20: #{tpu_custom_call.1} parent=11 // pred_fallthru
          _
        // Predicated region
        $region21: #{tpu_custom_call.1} parent=11 // pred_check
          %p215 = pneg %p105
        $region22: #{tpu_custom_call.1} parent=11 // pred_check_branch
          %217 = sbr.rel (%p215) target = $region24
        $region23: #{tpu_custom_call.1} parent=11 // pred_region
          _
        $region24: #{tpu_custom_call.1} parent=11 // pred_fallthru
          _
        // Predicated region
        $region25: #{tpu_custom_call.1} parent=11 // pred_check
          %p218 = pneg %p126
        $region26: #{tpu_custom_call.1} parent=11 // pred_check_branch
          %220 = sbr.rel (%p218) target = $region28
        $region27: #{tpu_custom_call.1} parent=11 // pred_region
          _
        $region28: #{tpu_custom_call.1} parent=11 // pred_fallthru
          _
        // Predicated region
        $region29: #{tpu_custom_call.1} parent=11 // pred_check
          %p221 = pneg %p147
        $region30: #{tpu_custom_call.1} parent=11 // pred_check_branch
          %223 = sbr.rel (%p221) target = $region32
        $region31: #{tpu_custom_call.1} parent=11 // pred_region
          _
        $region32: #{tpu_custom_call.1} parent=11 // pred_fallthru
          _
        // Predicated region
        $region33: #{tpu_custom_call.1} parent=11 // pred_check
          %p224 = pneg %p168
        $region34: #{tpu_custom_call.1} parent=11 // pred_check_branch
          %226 = sbr.rel (%p224) target = $region36
        $region35: #{tpu_custom_call.1} parent=11 // pred_region
          _
        $region36: #{tpu_custom_call.1} parent=11 // pred_fallthru
          _
      $region12: #{tpu_custom_call.1} parent=5 // pred_fallthru
        _
      %p227 = scmp.lt.s32.totalorder %s16, 2
      // Predicated region
      $region37: #{tpu_custom_call.1} parent=5 // pred_check
        %p228 = pneg %p227
      $region38: #{tpu_custom_call.1} parent=5 // pred_check_branch
        %230 = sbr.rel (%p228) target = $region40
      $region39: #{tpu_custom_call.1} parent=5 // pred_region
        // Predicated region
        $region41: #{tpu_custom_call.1} parent=39 // pred_check
          %p231 = pneg %p36
        $region42: #{tpu_custom_call.1} parent=39 // pred_check_branch
          %233 = sbr.rel (%p231) target = $region44
        $region43: #{tpu_custom_call.1} parent=39 // pred_region
          %p234 = scmp.lt.s32.totalorder %s16, 1
          %s235 = scalar_select %p234, %s16, 1
          %s236 = smul.addr %s235, 8
          %s237 = scalar_lea.vmem %s0, %s236
        $region44: #{tpu_custom_call.1} parent=39 // pred_fallthru
          _
      $region40: #{tpu_custom_call.1} parent=5 // pred_fallthru
        _
      %p238 = scmp.le.s32.totalorder 1, %s16
      %p239 = scmp.lt.s32.totalorder %s16, 3
      %p240 = pnand %p238, %p239
      %p241 = pneg %p240
      // Predicated region
      $region45: #{tpu_custom_call.1} parent=5 // pred_check
        _
      $region46: #{tpu_custom_call.1} parent=5 // pred_check_branch
        %243 = sbr.rel (%p240) target = $region48
      $region47: #{tpu_custom_call.1} parent=5 // pred_region
        %s244 = ssub.s32 %s16, 1
        %p245 = scmp.lt.s32.totalorder %s21, 1
        %s246 = scalar_select %p245, %s21, 1
        %s247 = smul.addr %s246, 8
        %s248 = scalar_lea.vmem %s0, %s247
        %p249 = pneg %p42
        %p250 = pneg %p39
        %p251 = pneg %p63
        %p252 = pneg %p60
        %p253 = pneg %p84
        %p254 = pneg %p81
        %p255 = pneg %p105
        %p256 = pneg %p102
        %p257 = pneg %p126
        %p258 = pneg %p123
        %p259 = pneg %p147
        %p260 = pneg %p144
        %p261 = pneg %p168
        %p262 = pneg %p165
        %p263 = pneg %p194
        %p264 = pneg %p191
        %s265 = sand.u32 %s181, 1
        %s266 = scalar_lea.sflag [#allocation3], %s265
        %s267 = sand.u32 %s181, 1
        %s268 = smul.addr %s267, 8
        %s269 = scalar_lea.vmem [#allocation2], %s268
        %p270 = scmp.lt.s32.totalorder %s21, 1
        %s271 = scalar_select %p270, %s21, 1
        %s272 = smul.addr %s271, 8
        %s273 = scalar_lea.vmem %s0, %s272
        %v274 = vld [vmem:[%s273] sm:$0xff]
        %v275 = vld [vmem:[%s1] sm:$0x1]
        %v276 = vld [vmem:[%s2] sm:$0x1]
        %vm277 = vcmask 261120
        %v278 = vsel %vm277, %v274, 0.0
        %279 = vadd.xlane.f32.xlu0 %v278
        %v280 = vpop.xlane.xlu0 %279
        %v281 = vrcp.pop 32.0
        %v282 = vmul.f32 32.0, %v281
        %v283 = vsub.f32 1.0, %v282
        %v284 = vmul.f32 %v281, %v283
        %v285 = vadd.f32 %v281, %v284
        %vm286 = vweird.f32 %v281
        %v287 = vsel %vm286, %v281, %v285
        %v288 = vmul.f32 %v280, %v287
        %v289 = vsub.f32 %v274, %v288
        %v290 = vmul.f32 %v289, %v289
        %v291 = vsel %vm277, %v290, 0.0
        %292 = vadd.xlane.f32.xlu0 %v291
        %v293 = vpop.xlane.xlu0 %292
        %v294 = vmul.f32 %v293, 0.032258064
        %v295 = vrsqrt.pop %v294
        %v296 = vmul.f32 %v295, %v294
        %v297 = vmul.f32 %v296, %v295
        %v298 = vmul.f32 0.5, %v297
        %v299 = vsub.f32 1.5, %v298
        %v300 = vmul.f32 %v295, %v299
        %v301 = vmul.f32 %v294, %v300
        %vm302 = vcmp.eq.f32.partialorder %v294, inf
        %v303 = vsel %vm302, %v294, %v301
        %vm304 = vcmp.eq.f32.partialorder %v294, 0.0
        %v305 = vand.u32 %v294, 2147483648
        %v306 = vsel %vm304, %v305, %v303
        %v307 = vadd.f32 %v306, 1e-06
        %v308 = vrcp.pop %v307
        %v309 = vmul.f32 %v307, %v308
        %v310 = vsub.f32 1.0, %v309
        %v311 = vmul.f32 %v308, %v310
        %v312 = vadd.f32 %v308, %v311
        %vm313 = vweird.f32 %v307
        %vm314 = vweird.f32 %v308
        %vm315 = vmor %vm313, %vm314
        %v316 = vsel %vm315, %v308, %v312
        %v317 = vand.u32 2147483647, %v307
        %vm318 = vcmp.eq.f32.partialorder %v317, 8.507059e+37
        %v319 = vand.u32 %v307, 2147483648
        %v320 = vor.u32 1.1754944e-38, %v319
        %v321 = vsel %vm318, %v320, %v316
        %v323 = vperm.slane %v275, 0
        %v325 = vmul.f32 %v323, %v289
        %v326 = vmul.f32 %v325, %v321
        %v328 = vperm.slane %v276, 0
        %v330 = vadd.f32 %v326, %v328
        %v331 = vld [vmem:[%s3] sm:$0xff]
        %v332 = vld [vmem:[%s3 + $0x8] sm:$0xff]
        %v333 = vld [vmem:[%s3 + $0x10] sm:$0xff]
        %v334 = vld [vmem:[%s3 + $0x18] sm:$0xff]
        %v335 = vld [vmem:[%s4] sm:$0x1]
        %v337 = vperm.slane %v335, 0
        %v340 = vsel %vm277, %v330, 0
        %342 = vmatpush.msra.mxu0 0.0
        %343 = vmatpush.msra.mxu0 0.0
        %344 = vmatpush.msra.mxu0 0.0
        %345 = vmatpush.msra.mxu0 0.0
        %346 = vmatpush.msra.mxu0 0.0
        %347 = vmatpush.msra.mxu0 0.0
        %348 = vmatpush.msra.mxu0 0.0
        %349 = vmatpush.msra.mxu0 0.0
        %350 = vmatpush.msra.mxu0 0.0
        %351 = vmatpush.msra.mxu0 0.0
        %352 = vmatpush.msra.mxu0 0.0
        %353 = vmatpush.msra.mxu0 0.0
        %354 = vmatpush.msra.mxu0 %v334
        %355 = vmatpush.msra.mxu0 %v333
        %356 = vmatpush.msra.mxu0 %v332
        %357 = vmatpush.msra.mxu0 %v331
        %358 = vmatmul.f32.gmra.mxu0 %v340
        %v359 = vpop.f32.mrf.mxu0
        %v360 = vadd.f32 %v337, %v359
        %361 = vdwg.mxu0
        %v362 = vmax.f32 %v360, 0.0
        %v363 = vld [vmem:[%s6] sm:$0x1]
        %v365 = vperm.slane %v363, 0
        %v367 = vadd.f32 %v274, %v365
        %v368 = vld [vmem:[%s5] sm:$0xff]
        %v369 = vld [vmem:[%s5 + $0x8] sm:$0xff]
        %v370 = vld [vmem:[%s5 + $0x10] sm:$0xff]
        %v371 = vld [vmem:[%s5 + $0x18] sm:$0xff]
        %v372 = vld [vmem:[%s5 + $0x20] sm:$0xff]
        %v373 = vld [vmem:[%s5 + $0x28] sm:$0xff]
        %v374 = vld [vmem:[%s5 + $0x30] sm:$0xff]
        %v375 = vld [vmem:[%s5 + $0x38] sm:$0xff]
        %vm376 = vcmask 523264
        %v378 = vsel %vm376, %v362, 0
        %380 = vmatpush.msra.mxu0 0.0
        %381 = vmatpush.msra.mxu0 0.0
        %382 = vmatpush.msra.mxu0 0.0
        %383 = vmatpush.msra.mxu0 0.0
        %384 = vmatpush.msra.mxu0 0.0
        %385 = vmatpush.msra.mxu0 0.0
        %386 = vmatpush.msra.mxu0 0.0
        %387 = vmatpush.msra.mxu0 0.0
        %388 = vmatpush.msra.mxu0 %v375
        %389 = vmatpush.msra.mxu0 %v374
        %390 = vmatpush.msra.mxu0 %v373
        %391 = vmatpush.msra.mxu0 %v372
        %392 = vmatpush.msra.mxu0 %v371
        %393 = vmatpush.msra.mxu0 %v370
        %394 = vmatpush.msra.mxu0 %v369
        %395 = vmatpush.msra.mxu0 %v368
        %396 = vmatmul.f32.gmra.mxu0 %v378
        %v397 = vpop.f32.mrf.mxu0
        %v398 = vadd.f32 0.0, %v397
        %399 = vdwg.mxu0
        %v400 = vadd.f32 %v367, %v398
        %401 = vst.msk [vmem:[%s269] sm:$0xff] %vm277, %v400
        %s402 = sand.u32 %s181, 1
        %s403 = scalar_lea.sflag [#allocation3], %s402
        %s404 = sand.u32 %s181, 1
        %s405 = smul.addr %s404, 8
        %s406 = scalar_lea.vmem [#allocation2], %s405
        // Predicated region
        $region49: #{tpu_custom_call.1} parent=47 // pred_check
          %p407 = pneg %p191
        $region50: #{tpu_custom_call.1} parent=47 // pred_check_branch
          %409 = sbr.rel (%p407) target = $region52
        $region51: #{tpu_custom_call.1} parent=47 // pred_region
          %411 = vsyncadd %s403, 0
          %s412 = smul.addr %s21, 8
          %s413 = scalar_lea.hbm %s7, %s412
          %s415 = sshll.u32 %s406, 4
          %s416 = int_to_ptr.vmem [resolvable:$true] %s415
          %s417 = sshll.u32 %s413, 4
          %s418 = int_to_ptr.hbm [resolvable:$true] %s417
          %420 = dma.vmem_to_hbm [thread:$0]  %s416, 128, %s418, %s403
        $region52: #{tpu_custom_call.1} parent=47 // pred_fallthru
          _
      $region48: #{tpu_custom_call.1} parent=5 // pred_fallthru
        _
      %p421 = scmp.le.s32.totalorder 2, %s16
      // Predicated region
      $region53: #{tpu_custom_call.1} parent=5 // pred_check
        %p422 = pneg %p421
      $region54: #{tpu_custom_call.1} parent=5 // pred_check_branch
        %424 = sbr.rel (%p422) target = $region56
      $region55: #{tpu_custom_call.1} parent=5 // pred_region
        %s425 = ssub.s32 %s16, 2
        // Predicated region
        $region57: #{tpu_custom_call.1} parent=55 // pred_check
          %p426 = pneg %p197
        $region58: #{tpu_custom_call.1} parent=55 // pred_check_branch
          %428 = sbr.rel (%p426) target = $region60
        $region59: #{tpu_custom_call.1} parent=55 // pred_region
          %s429 = sand.u32 %s182, 1
          %s430 = scalar_lea.sflag [#allocation3], %s429
          %s431 = sand.u32 %s182, 1
          %s432 = smul.addr %s431, 8
          %s433 = scalar_lea.vmem [#allocation2], %s432
          %435 = dma.done %s430, 128
        $region60: #{tpu_custom_call.1} parent=55 // pred_fallthru
          _
      $region56: #{tpu_custom_call.1} parent=5 // pred_fallthru
        _
    $region6: #{tpu_custom_call.1} parent=1 // loop_footer
      %s20 = sadd.s32 1, %s16
    $region7: #{tpu_custom_call.1} parent=1 // loop_footer_branch
      %15 = sbr.rel target = $region3
    $region8: #{tpu_custom_call.1} parent=1 // loop_exit
      _
    %436 = vsyncpa [#allocation3], 1
    %s437 = scalar_lea.sflag [#allocation3], 1
    %438 = vsyncpa %s437, 1

</llo_original>
